<compile_context>
chip_gen: v7x
topology: tpu7x:2x2x1
jax: 0.10.0
libtpu: 0.0.40
codegen_flags: <defaults>
</compile_context>

<pallas_src>
import math

import jax
import jax.numpy as jnp
from jax.experimental import pallas as pl
from jax.experimental.pallas import tpu as pltpu

_INV_SQRT2 = 1.0 / math.sqrt(2.0)


# ---------------------------------------------------------------------------
# helpers
# ---------------------------------------------------------------------------
def _round_up(v, m):
    return ((v + m - 1) // m) * m


def _round_down(v, m):
    return (v // m) * m


def _cdiv(a, b):
    return (a + b - 1) // b


def _sublane_pad(c, itemsize):
    # rows occupied in a vreg tile: 8 for 4-byte, 16 for 2-byte, 32 for 1-byte
    mult = max(8, 32 // max(int(itemsize), 1))
    return _round_up(max(int(c), 1), mult)


# ---------------------------------------------------------------------------
# kernels
# ---------------------------------------------------------------------------
def _combiner_down_kernel_nobias(pyr_ref, x_ref, w_ref, o_ref):
    """One (batch, spatial-tile) block, bias-free (Unet_STFT path).

    pyr_ref: (Nin,  tS)   channels on sublanes, flattened H*W on lanes
    x_ref:   (Nout, tS)
    w_ref:   (Nout, Nin)  resident across the whole grid (constant index_map)
    o_ref:   (Nout, tS)   lane-dense output
    """
    acc = jnp.dot(w_ref[...].astype(jnp.float32),
                  pyr_ref[...].astype(jnp.float32),
                  preferred_element_type=jnp.float32)        # (Nout, tS) f32
    out = (acc + x_ref[...].astype(jnp.float32)) * _INV_SQRT2
    o_ref[...] = out.astype(o_ref.dtype)


def _combiner_down_kernel_bias(pyr_ref, x_ref, w_ref, b_ref, o_ref):
    """Same as above with a resident (Nout, 1) bias broadcast across lanes."""
    acc = jnp.dot(w_ref[...].astype(jnp.float32),
                  pyr_ref[...].astype(jnp.float32),
                  preferred_element_type=jnp.float32)
    acc = acc + b_ref[...].astype(jnp.float32)                # lane broadcast
    out = (acc + x_ref[...].astype(jnp.float32)) * _INV_SQRT2
    o_ref[...] = out.astype(o_ref.dtype)


# ---------------------------------------------------------------------------
# wrapper
# ---------------------------------------------------------------------------
def combiner_down_sum(pyr, x, weight, bias=None, *,
                      tile_s=None,
                      vmem_block_budget_bytes=24 * 1024 * 1024,
                      out_dtype=None,
                      use_pallas=None,
                      alias_x_to_out=False):
    """CombinerDown(mode='sum') forward: (Conv2d_1x1(pyr) [+bias] + x)/sqrt(2).

    Args:
      pyr:    (B, Nin, H, W)    NCHW
      x:      (B, Nout, H, W)   NCHW
      weight: (Nout, Nin, 1, 1) nn.Conv2d weight
      bias:   (Nout,) or None   (Unet_STFT uses bias=False)
      tile_s: optional explicit lane tile over flattened H*W; default is
              auto-sized from `vmem_block_budget_bytes`.
      out_dtype: result dtype; defaults to promote(pyr.dtype, x.dtype).
      use_pallas: True/False/None.  None = auto (Pallas only when total HBM
              traffic is large enough to amortize launch + per-step overhead).
      alias_x_to_out: alias x into the output buffer (needs donation at the
              jit boundary to actually save an allocation; off by default).
    Returns:
      (B, Nout, H, W) NCHW
    """
    B, Nin, H, W = pyr.shape
    Bx, Nout, Hx, Wx = x.shape
    assert (B, H, W) == (Bx, Hx, Wx), "pyr / x batch or spatial mismatch"
    assert weight.shape[0] == Nout and weight.shape[1] == Nin, "weight shape"
    S = H * W

    if out_dtype is None:
        out_dtype = jnp.result_type(pyr.dtype, x.dtype)
    out_dtype = jnp.dtype(out_dtype)

    w2d = weight.reshape(Nout, Nin)                      # no transpose needed
    b2d = None if bias is None else bias.reshape(Nout, 1)

    pyr_item = jnp.dtype(pyr.dtype).itemsize
    x_item = jnp.dtype(x.dtype).itemsize

    # ---- dispatch policy: tiny problems go to plain (fusable) XLA ----------
    if use_pallas is None:
        total_bytes = (pyr.size * pyr_item + x.size * x_item
                       + B * Nout * S * out_dtype.itemsize)
        use_pallas = total_bytes >= (2 << 20)

    if not use_pallas:
        y = jnp.einsum("oi,bihw->bohw",
                       w2d.astype(jnp.float32), pyr.astype(jnp.float32))
        if b2d is not None:
            y = y + b2d.astype(jnp.float32).reshape(1, Nout, 1, 1)
        return ((y + x.astype(jnp.float32)) * _INV_SQRT2).astype(out_dtype)

    # NCHW already has channels then contiguous H*W: just collapse.
    pyr_f = pyr.reshape(B, Nin, S)
    x_f = x.reshape(B, Nout, S)

    # ---- lane tile selection (sized against the VMEM block budget) ---------
    # bytes of double-buffered pyr/x/out blocks per lane column
    per_ts_bytes = 2 * (_sublane_pad(Nin, pyr_item) * pyr_item
                        + _sublane_pad(Nout, x_item) * x_item
                        + _sublane_pad(Nout, out_dtype.itemsize)
                        * out_dtype.itemsize)
    if tile_s is None:
        tS = _round_down(max(vmem_block_budget_bytes // per_ts_bytes, 128), 128)
    else:
        tS = max(128, _round_up(int(tile_s), 128))

    if S <= 128:
        tS = S                                    # single block == full dim
    else:
        tS = max(128, min(tS, _round_down(S, 128)))
        # v7x megacore balance: with both axes "parallel", make sure there are
        # at least 2 program instances when B == 1.
        if B == 1 and _cdiv(S, tS) < 2 and S > 256:
            tS = max(128, _round_up(_cdiv(S, 2), 128))

    n_tiles = _cdiv(S, tS)
    grid = (B, n_tiles)

    # Raise the scoped-VMEM limit only when the working set needs it
    # (v5e default is 16 MiB); never above 32 MiB (safe on all of v5e/v6e/v7x).
    est_vmem = per_ts_bytes * tS + 4 * 8 * 128 * 4    # blocks + resident w/b
    vmem_limit = None
    if est_vmem > 14 * 1024 * 1024:
        vmem_limit = min(_round_up(est_vmem + 4 * 1024 * 1024, 1 << 20),
                         32 * 1024 * 1024)

    if b2d is None:
        kernel = _combiner_down_kernel_nobias
        in_specs = [
            pl.BlockSpec((None, Nin, tS), lambda b, s: (b, 0, s)),
            pl.BlockSpec((None, Nout, tS), lambda b, s: (b, 0, s)),
            pl.BlockSpec((Nout, Nin), lambda b, s: (0, 0)),    # resident weight
        ]
        args = (pyr_f, x_f, w2d)
    else:
        kernel = _combiner_down_kernel_bias
        in_specs = [
            pl.BlockSpec((None, Nin, tS), lambda b, s: (b, 0, s)),
            pl.BlockSpec((None, Nout, tS), lambda b, s: (b, 0, s)),
            pl.BlockSpec((Nout, Nin), lambda b, s: (0, 0)),    # resident weight
            pl.BlockSpec((Nout, 1), lambda b, s: (0, 0)),      # resident bias
        ]
        args = (pyr_f, x_f, w2d, b2d)

    io_alias = {}
    if alias_x_to_out and x_f.dtype == out_dtype:
        io_alias = {1: 0}

    out_f = pl.pallas_call(
        kernel,
        out_shape=jax.ShapeDtypeStruct((B, Nout, S), out_dtype),
        grid_spec=pltpu.PrefetchScalarGridSpec(
            num_scalar_prefetch=0,
            grid=grid,
            in_specs=in_specs,
            out_specs=pl.BlockSpec((None, Nout, tS), lambda b, s: (b, 0, s)),
        ),
        compiler_params=pltpu.CompilerParams(
            dimension_semantics=("parallel", "parallel"),
            vmem_limit_bytes=vmem_limit),
        input_output_aliases=io_alias,
    )(*args)

    return out_f.reshape(B, Nout, H, W)


# ---------------------------------------------------------------------------
# pure-JAX reference
# ---------------------------------------------------------------------------
def _reference(pyr, x, weight, bias):
    Nout, Nin = weight.shape[0], weight.shape[1]
    y = jnp.einsum("oi,bihw->bohw",
                   weight.reshape(Nout, Nin).astype(jnp.float32),
                   pyr.astype(jnp.float32))
    if bias is not None:
        y = y + bias.astype(jnp.float32).reshape(1, Nout, 1, 1)
    return (y + x.astype(jnp.float32)) * _INV_SQRT2


if __name__ == "__main__":
    key = jax.random.PRNGKey(0)

    # Case 1: Unet_STFT-like CombinerDown shapes (pyr = 2-channel STFT pyramid,
    # bias=False), f32, S = 256 (multiple of 128).
    B, Nin, Nout, H, W = 2, 2, 8, 16, 16
    k1, k2, k3, key = jax.random.split(key, 4)
    pyr = jax.random.normal(k1, (B, Nin, H, W), dtype=jnp.float32)
    x = jax.random.normal(k2, (B, Nout, H, W), dtype=jnp.float32)
    weight = jax.random.normal(k3, (Nout, Nin, 1, 1), dtype=jnp.float32) * 0.1

    out = jax.block_until_ready(
        combiner_down_sum(pyr, x, weight, bias=None, use_pallas=True))
    ref = _reference(pyr, x, weight, None)
    assert out.shape == (B, Nout, H, W)
    assert jnp.allclose(out, ref, atol=1e-5, rtol=1e-5)

    # Case 2: ragged H*W (not a multiple of 128) + bias -> exercises the
    # partial boundary block (no wrapper-side pad, no output slice).
    B, Nin, Nout, H, W = 2, 4, 16, 10, 13
    k1, k2, k3, k4, key = jax.random.split(key, 5)
    pyr = jax.random.normal(k1, (B, Nin, H, W), dtype=jnp.float32)
    x = jax.random.normal(k2, (B, Nout, H, W), dtype=jnp.float32)
    weight = jax.random.normal(k3, (Nout, Nin, 1, 1), dtype=jnp.float32) * 0.1
    bias = jax.random.normal(k4, (Nout,), dtype=jnp.float32) * 0.1

    out2 = jax.block_until_ready(
        combiner_down_sum(pyr, x, weight, bias, use_pallas=True))
    ref2 = _reference(pyr, x, weight, bias)
    assert out2.shape == (B, Nout, H, W)
    assert jnp.allclose(out2, ref2, atol=1e-5, rtol=1e-5)

    # Case 3: bf16 I/O path (HBM traffic halved; f32 accumulation in-kernel).
    B, Nin, Nout, H, W = 2, 2, 8, 16, 16
    k1, k2, k3, key = jax.random.split(key, 4)
    pyr_bf = jax.random.normal(k1, (B, Nin, H, W), dtype=jnp.float32).astype(jnp.bfloat16)
    x_bf = jax.random.normal(k2, (B, Nout, H, W), dtype=jnp.float32).astype(jnp.bfloat16)
    weight3 = jax.random.normal(k3, (Nout, Nin, 1, 1), dtype=jnp.float32) * 0.1

    out3 = jax.block_until_ready(
        combiner_down_sum(pyr_bf, x_bf, weight3, bias=None, use_pallas=True))
    ref3 = _reference(pyr_bf, x_bf, weight3, None)
    assert out3.dtype == jnp.bfloat16
    assert jnp.allclose(out3.astype(jnp.float32), ref3, atol=3e-2, rtol=3e-2)

    print("KERNEL_OK")
</pallas_src>

<mosaic_0001>
module attributes {stable_mosaic.version = 11 : i64} {
  func.func @_combiner_down_kernel_nobias(%arg0: i32, %arg1: i32, %arg2: memref<1x2x256xf32, #tpu.memory_space<vmem>>, %arg3: memref<1x8x256xf32, #tpu.memory_space<vmem>>, %arg4: memref<8x2xf32, #tpu.memory_space<vmem>>, %arg5: memref<1x8x256xf32, #tpu.memory_space<vmem>>) attributes {dimension_semantics = [#tpu.dimension_semantics<parallel>, #tpu.dimension_semantics<parallel>], iteration_bounds = array<i64: 2, 1>, scalar_prefetch = 0 : i64, scratch_operands = 0 : i64, tpu.core_type = #tpu.core_type<tc>, window_params = [{transform_indices = @transform_0, window_bounds = array<i64: 1, 2, 256>}, {transform_indices = @transform_1, window_bounds = array<i64: 1, 8, 256>}, {pipeline_mode = #tpu.pipeline_mode<synchronous>, transform_indices = @transform_2, window_bounds = array<i64: 8, 2>}, {transform_indices = @transform_3, window_bounds = array<i64: 1, 8, 256>}]} {
    %c0 = arith.constant 0 : index
    %c0_0 = arith.constant 0 : index
    %0 = vector.load %arg4[%c0, %c0_0] : memref<8x2xf32, #tpu.memory_space<vmem>>, vector<8x2xf32>
    %c0_1 = arith.constant 0 : index
    %c0_2 = arith.constant 0 : index
    %c0_3 = arith.constant 0 : index
    %1 = vector.load %arg2[%c0_1, %c0_2, %c0_3] : memref<1x2x256xf32, #tpu.memory_space<vmem>>, vector<1x2x256xf32>
    %2 = vector.shape_cast %1 : vector<1x2x256xf32> to vector<2x256xf32>
    %cst = arith.constant dense<0.000000e+00> : vector<8x256xf32>
    %3 = tpu.matmul %0, %2, %cst {dimension_numbers = #tpu.dot_dimension_numbers<[1], [0], [0], [1], [0, 0, 1, 1], [], []>} : vector<8x2xf32>, vector<2x256xf32>, vector<8x256xf32> -> vector<8x256xf32>
    %c0_4 = arith.constant 0 : index
    %c0_5 = arith.constant 0 : index
    %c0_6 = arith.constant 0 : index
    %4 = vector.load %arg3[%c0_4, %c0_5, %c0_6] : memref<1x8x256xf32, #tpu.memory_space<vmem>>, vector<1x8x256xf32>
    %5 = vector.shape_cast %4 : vector<1x8x256xf32> to vector<8x256xf32>
    %6 = arith.addf %3, %5 : vector<8x256xf32>
    %cst_7 = arith.constant 0.707106769 : f32
    %7 = vector.broadcast %cst_7 : f32 to vector<8x256xf32>
    %8 = arith.mulf %6, %7 : vector<8x256xf32>
    %c0_8 = arith.constant 0 : index
    %c0_9 = arith.constant 0 : index
    %c0_10 = arith.constant 0 : index
    %9 = vector.load %arg5[%c0_8, %c0_9, %c0_10] : memref<1x8x256xf32, #tpu.memory_space<vmem>>, vector<1x8x256xf32>
    %10 = vector.shape_cast %9 : vector<1x8x256xf32> to vector<8x256xf32>
    %11 = vector.shape_cast %8 : vector<8x256xf32> to vector<1x8x256xf32>
    tpu.vector_store %arg5[%c0_8, %c0_9, %c0_10], %11 {strides = array<i32>} : memref<1x8x256xf32, #tpu.memory_space<vmem>>, vector<1x8x256xf32>,
    return
  }
  func.func @transform_0(%arg0: i32, %arg1: i32) -> (i32, i32, i32) {
    %c0_i32 = arith.constant 0 : i32
    %c0_i32_0 = arith.constant 0 : i32
    return %arg0, %c0_i32, %arg1 : i32, i32, i32
  }
  func.func @transform_1(%arg0: i32, %arg1: i32) -> (i32, i32, i32) {
    %c0_i32 = arith.constant 0 : i32
    %c0_i32_0 = arith.constant 0 : i32
    return %arg0, %c0_i32, %arg1 : i32, i32, i32
  }
  func.func @transform_2(%arg0: i32, %arg1: i32) -> (i32, i32) {
    %c0_i32 = arith.constant 0 : i32
    %c0_i32_0 = arith.constant 0 : i32
    %c0_i32_1 = arith.constant 0 : i32
    return %c0_i32, %c0_i32_0 : i32, i32
  }
  func.func @transform_3(%arg0: i32, %arg1: i32) -> (i32, i32, i32) {
    %c0_i32 = arith.constant 0 : i32
    %c0_i32_0 = arith.constant 0 : i32
    return %arg0, %c0_i32, %arg1 : i32, i32, i32
  }
}

</mosaic_0001>

<llo_original>
// kernel: tpu_custom_call.1
$region0: #{tpu_custom_call.1}
  #allocation0 [shape = 'u32[]', space=smem, size = 0x4, offset = 0x4, fixed_abs, tag = 'smem constant byte address 0x4 - core index']
  #allocation1 [shape = 'u32[144,128]{1,0:T(1,128)}', space=vmem, size = 0x12000, scoped, tag = 'internal scratch']
  %s0 = inlined_call_operand.vmem [shape: f32[2,2,256], index: 0, kind: input, shape index: {}]
  %s1 = inlined_call_operand.hbm [shape: f32[2,8,256], index: 1, kind: input, shape index: {}]
  %s2 = inlined_call_operand.vmem [shape: f32[8,2], index: 2, kind: input, shape index: {}]
  %s3 = inlined_call_operand.hbm [shape: f32[2,8,256], index: 3, kind: output, shape index: {}]
  %s4 = sld [smem:[#allocation0]]
  $region49: #{tpu_custom_call.1} parent=0
    _
  %s6 = ssub.s32 1, %s4
  %s7 = scalar_select 0, %s6, %s4
  $region1: #{tpu_custom_call.1} parent=0
    #allocation2 [shape = 'u8[16384]{0}', space=vmem, size = 0x4000, scoped, tag = 'input window, operand 1']
    #allocation3 [shape = 's32[2]{0}', space=sflag, size = 0x8, scoped, tag = 'scoped memory for tpu_custom_call.1']
    #allocation4 [shape = 's32[2]{0}', space=sflag, size = 0x8, scoped, tag = 'scoped memory for tpu_custom_call.1']
    #allocation5 [shape = 'u8[16384]{0}', space=vmem, size = 0x4000, scoped, tag = 'output window, operand 0']
    %8 = vsyncpa [#allocation3], 0
    %s9 = scalar_lea.sflag [#allocation3], 1
    %10 = vsyncpa %s9, 0
    %11 = vsyncpa [#allocation4], 0
    %s12 = scalar_lea.sflag [#allocation4], 1
    %13 = vsyncpa %s12, 0
    loop: start=0, step=1, limit=4
    $region2: #{tpu_custom_call.1} parent=1 // loop_pre_header
      _
    $region3: #{tpu_custom_call.1} parent=1 // loop_header
      %s15 = sphi 0, %s19
      %p16 = scmp.ge.s32.totalorder %s15, 4
      %s22 = sphi 0, %s34
      %s23 = sphi 0, %s30
      %s24 = sphi 0, %s22
      %s25 = sphi 0, %s23
      %s26 = sphi 0, %s24
      %s27 = sphi 0, %s25
      %s39 = sphi 0, %s41
      %s42 = sphi 0, %s39
      %s43 = sphi 0, %s42
      %s59 = sphi 0, %s43
      %s67 = sphi 0, %s69
      %s70 = sphi 0, %s67
      %s71 = sphi 0, %s70
      %s87 = sphi 0, %s71
      %s91 = sphi 0, %s91
      %s93 = sphi 0, %s91
      %s94 = sphi 0, %s93
      %s108 = sphi 0, %s94
      %s116 = sphi 0, %s118
      %s119 = sphi 0, %s116
      %s120 = sphi 0, %s119
      %s136 = sphi 0, %s120
    $region4: #{tpu_custom_call.1} parent=1 // loop_header_branch
      %18 = sbr.rel (%p16) target = $region8
    $region5: #{tpu_custom_call.1} parent=1 // loop_body
      %s20 = ssub.s32 %s15, 1
      %s21 = ssub.s32 %s15, 2
      %s28 = sadd.s32 1, %s23
      %p29 = scmp.ge.s32.totalorder %s28, 1
      %s30 = scalar_select %p29, 0, %s28
      %s31 = sadd.s32 1, %s22
      %s32 = scalar_select %p29, %s31, %s22
      %p33 = scmp.ge.s32.totalorder %s32, 2
      %s34 = scalar_select %p33, 0, %s32
      %s35 = ssub.s32 %s22, %s34
      %s36 = ssub.s32 %s23, %s30
      %s37 = sor.u32 %s35, %s36
      %p38 = scmp.eq.s32.totalorder %s37, 0
      %s40 = sadd.s32 %s39, 1
      %s41 = scalar_select %p38, %s39, %s40
      %p44 = pneg %p38
      %p45 = scmp.eq.s32.totalorder %s15, 1
      %p46 = por %p44, %p45
      %p47 = scmp.ne.s32.totalorder %s39, %s42
      %p48 = scmp.eq.s32.totalorder %s15, 0
      %p49 = por %p47, %p48
      %p50 = scmp.ne.s32.totalorder %s39, %s42
      %p51 = scmp.eq.s32.totalorder %s20, 1
      %p52 = por %p50, %p51
      %p53 = scmp.ne.s32.totalorder %s42, %s43
      %p54 = scmp.eq.s32.totalorder %s20, 0
      %p55 = por %p53, %p54
      %p56 = scmp.ne.s32.totalorder %s42, %s43
      %p57 = scmp.eq.s32.totalorder %s21, 1
      %p58 = por %p56, %p57
      %p60 = scmp.ne.s32.totalorder %s43, %s59
      %p61 = scmp.eq.s32.totalorder %s21, 0
      %p62 = por %p60, %p61
      %s63 = ssub.s32 %s22, %s34
      %s64 = ssub.s32 %s23, %s30
      %s65 = sor.u32 %s63, %s64
      %p66 = scmp.eq.s32.totalorder %s65, 0
      %s68 = sadd.s32 %s67, 1
      %s69 = scalar_select %p66, %s67, %s68
      %p72 = pneg %p66
      %p73 = scmp.eq.s32.totalorder %s15, 1
      %p74 = por %p72, %p73
      %p75 = scmp.ne.s32.totalorder %s67, %s70
      %p76 = scmp.eq.s32.totalorder %s15, 0
      %p77 = por %p75, %p76
      %p78 = scmp.ne.s32.totalorder %s67, %s70
      %p79 = scmp.eq.s32.totalorder %s20, 1
      %p80 = por %p78, %p79
      %p81 = scmp.ne.s32.totalorder %s70, %s71
      %p82 = scmp.eq.s32.totalorder %s20, 0
      %p83 = por %p81, %p82
      %p84 = scmp.ne.s32.totalorder %s70, %s71
      %p85 = scmp.eq.s32.totalorder %s21, 1
      %p86 = por %p84, %p85
      %p88 = scmp.ne.s32.totalorder %s71, %s87
      %p89 = scmp.eq.s32.totalorder %s21, 0
      %p90 = por %p88, %p89
      %s92 = sadd.s32 %s91, 1
      %p95 = scmp.eq.s32.totalorder %s15, 1
      %p96 = scmp.ne.s32.totalorder %s91, %s93
      %p97 = scmp.eq.s32.totalorder %s15, 0
      %p98 = por %p96, %p97
      %p99 = scmp.ne.s32.totalorder %s91, %s93
      %p100 = scmp.eq.s32.totalorder %s20, 1
      %p101 = por %p99, %p100
      %p102 = scmp.ne.s32.totalorder %s93, %s94
      %p103 = scmp.eq.s32.totalorder %s20, 0
      %p104 = por %p102, %p103
      %p105 = scmp.ne.s32.totalorder %s93, %s94
      %p106 = scmp.eq.s32.totalorder %s21, 1
      %p107 = por %p105, %p106
      %p109 = scmp.ne.s32.totalorder %s94, %s108
      %p110 = scmp.eq.s32.totalorder %s21, 0
      %p111 = por %p109, %p110
      %s112 = ssub.s32 %s22, %s34
      %s113 = ssub.s32 %s23, %s30
      %s114 = sor.u32 %s112, %s113
      %p115 = scmp.eq.s32.totalorder %s114, 0
      %s117 = sadd.s32 %s116, 1
      %s118 = scalar_select %p115, %s116, %s117
      %p121 = pneg %p115
      %p122 = scmp.eq.s32.totalorder %s15, 1
      %p123 = por %p121, %p122
      %p124 = scmp.ne.s32.totalorder %s116, %s119
      %p125 = scmp.eq.s32.totalorder %s15, 0
      %p126 = por %p124, %p125
      %p127 = scmp.ne.s32.totalorder %s116, %s119
      %p128 = scmp.eq.s32.totalorder %s20, 1
      %p129 = por %p127, %p128
      %p130 = scmp.ne.s32.totalorder %s119, %s120
      %p131 = scmp.eq.s32.totalorder %s20, 0
      %p132 = por %p130, %p131
      %p133 = scmp.ne.s32.totalorder %s119, %s120
      %p134 = scmp.eq.s32.totalorder %s21, 1
      %p135 = por %p133, %p134
      %p137 = scmp.ne.s32.totalorder %s120, %s136
      %p138 = scmp.eq.s32.totalorder %s21, 0
      %p139 = por %p137, %p138
      %p140 = scmp.le.s32.totalorder 1, %s15
      %p141 = scmp.lt.s32.totalorder %s15, 3
      %p142 = pnand %p140, %p141
      %p143 = pneg %p142
      // Predicated region
      $region9: #{tpu_custom_call.1} parent=5 // pred_check
        _
      $region10: #{tpu_custom_call.1} parent=5 // pred_check_branch
        %145 = sbr.rel (%p142) target = $region12
      $region11: #{tpu_custom_call.1} parent=5 // pred_region
        %s146 = ssub.s32 %s15, 1
        // Predicated region
        $region13: #{tpu_custom_call.1} parent=11 // pred_check
          %p147 = pneg %p104
        $region14: #{tpu_custom_call.1} parent=11 // pred_check_branch
          %149 = sbr.rel (%p147) target = $region16
        $region15: #{tpu_custom_call.1} parent=11 // pred_region
          _
        $region16: #{tpu_custom_call.1} parent=11 // pred_fallthru
          _
      $region12: #{tpu_custom_call.1} parent=5 // pred_fallthru
        _
      %p150 = scmp.lt.s32.totalorder %s15, 2
      // Predicated region
      $region17: #{tpu_custom_call.1} parent=5 // pred_check
        %p151 = pneg %p150
      $region18: #{tpu_custom_call.1} parent=5 // pred_check_branch
        %153 = sbr.rel (%p151) target = $region20
      $region19: #{tpu_custom_call.1} parent=5 // pred_region
        // Predicated region
        $region21: #{tpu_custom_call.1} parent=19 // pred_check
          %p154 = pneg %p49
        $region22: #{tpu_custom_call.1} parent=19 // pred_check_branch
          %156 = sbr.rel (%p154) target = $region24
        $region23: #{tpu_custom_call.1} parent=19 // pred_region
          %s157 = smul.u32 2, %s23
          %p158 = scmp.lt.s32.totalorder %s22, 1
          %s159 = scalar_select %p158, %s22, 1
          %p160 = scmp.lt.s32.totalorder %s157, 1
          %s161 = scalar_select %p160, %s157, 1
          %s162 = smul.addr %s159, 2
          %s163 = sadd.s32 %s161, %s162
          %s164 = smul.addr %s163, 2
          %s165 = scalar_lea.vmem %s0, %s164
          %s166 = smul.u32 2, %s23
        $region24: #{tpu_custom_call.1} parent=19 // pred_fallthru
          _
        // Predicated region
        $region25: #{tpu_custom_call.1} parent=19 // pred_check
          %p167 = pneg %p77
        $region26: #{tpu_custom_call.1} parent=19 // pred_check_branch
          %169 = sbr.rel (%p167) target = $region28
        $region27: #{tpu_custom_call.1} parent=19 // pred_region
          %s170 = sand.u32 %s67, 1
          %s171 = scalar_lea.sflag [#allocation3], %s170
          %s172 = sand.u32 %s67, 1
          %s173 = smul.addr %s172, 16
          %s174 = scalar_lea.vmem [#allocation2], %s173
          %s175 = smul.u32 2, %s23
          %s177 = ssub.s32 256, 256
          %178 = vsyncadd %s171, %s177
          %s179 = smul.addr %s22, 2
          %s180 = sadd.s32 %s175, %s179
          %s181 = smul.addr %s180, 128
          %s182 = scalar_lea.hbm %s1, %s181
          %s184 = sshll.u32 %s174, 4
          %s185 = int_to_ptr.vmem [resolvable:$true] %s184
          %187 = dma.hbm_to_vmem [thread:$0]  %s182, 256, %s185, %s171
        $region28: #{tpu_custom_call.1} parent=19 // pred_fallthru
          _
      $region20: #{tpu_custom_call.1} parent=5 // pred_fallthru
        _
      %p188 = scmp.le.s32.totalorder 1, %s15
      %p189 = scmp.lt.s32.totalorder %s15, 3
      %p190 = pnand %p188, %p189
      %p191 = pneg %p190
      // Predicated region
      $region29: #{tpu_custom_call.1} parent=5 // pred_check
        _
      $region30: #{tpu_custom_call.1} parent=5 // pred_check_branch
        %193 = sbr.rel (%p190) target = $region32
      $region31: #{tpu_custom_call.1} parent=5 // pred_region
        %s194 = ssub.s32 %s15, 1
        %s195 = sand.u32 %s70, 1
        %s196 = scalar_lea.sflag [#allocation3], %s195
        %s197 = sand.u32 %s70, 1
        %s198 = smul.addr %s197, 16
        %s199 = scalar_lea.vmem [#allocation2], %s198
        // Predicated region
        $region33: #{tpu_custom_call.1} parent=31 // pred_check
          %p200 = pneg %p83
        $region34: #{tpu_custom_call.1} parent=31 // pred_check_branch
          %202 = sbr.rel (%p200) target = $region36
        $region35: #{tpu_custom_call.1} parent=31 // pred_region
          %203 = dma.done %s196, 256
        $region36: #{tpu_custom_call.1} parent=31 // pred_fallthru
          _
        %s204 = smul.u32 2, %s25
        %p205 = scmp.lt.s32.totalorder %s24, 1
        %s206 = scalar_select %p205, %s24, 1
        %p207 = scmp.lt.s32.totalorder %s204, 1
        %s208 = scalar_select %p207, %s204, 1
        %s209 = smul.addr %s206, 2
        %s210 = sadd.s32 %s208, %s209
        %s211 = smul.addr %s210, 2
        %s212 = scalar_lea.vmem %s0, %s211
        %p213 = pneg %p55
        %p214 = pneg %p52
        %s215 = sand.u32 %s70, 1
        %s216 = scalar_lea.sflag [#allocation3], %s215
        %s217 = sand.u32 %s70, 1
        %s218 = smul.addr %s217, 16
        %s219 = scalar_lea.vmem [#allocation2], %s218
        %p220 = pneg %p83
        %p221 = pneg %p80
        %p222 = pneg %p104
        %p223 = pneg %p101
        %p224 = pneg %p132
        %p225 = pneg %p129
        %s226 = sand.u32 %s119, 1
        %s227 = scalar_lea.sflag [#allocation4], %s226
        %s228 = sand.u32 %s119, 1
        %s229 = smul.addr %s228, 16
        %s230 = scalar_lea.vmem [#allocation5], %s229
        %s231 = smul.u32 2, %s25
        %p232 = scmp.lt.s32.totalorder %s24, 1
        %s233 = scalar_select %p232, %s24, 1
        %p234 = scmp.lt.s32.totalorder %s231, 1
        %s235 = scalar_select %p234, %s231, 1
        %s236 = smul.addr %s233, 2
        %s237 = sadd.s32 %s235, %s236
        %s238 = smul.addr %s237, 2
        %s239 = scalar_lea.vmem %s0, %s238
        %s240 = smul.u32 2, %s25
        %s241 = smul.u32 2, %s25
        %s242 = smul.u32 2, %s25
        %v243 = vld [vmem:[%s2] sm:$0xff]
        %v244 = vld [vmem:[%s239] sm:$0xf]
        %v245 = vld [vmem:[%s199] sm:$0xff]
        %v246 = vld [vmem:[%s199 + $0x8] sm:$0xff]
        %v249 = vunpack.c.l.s4 1983009808
        %v250 = vunpack.c.0.s8 %v249
        %v251 = vlaneseq
        %v252 = vshrl.u32 %v251, 7
        %v253 = vsub.s32 %v250, %v252
        %v254 = vrot.slane %v244, %v253
        %v255 = vcombine.high %v254, %v254
        %vm256 = vcmask 15360
        %v258 = vsel %vm256, %v243, 0
        %vm260 = vcmask 1041408
        %v261 = vsel %vm260, %v254, 0
        %v263 = vsel %vm260, %v255, 0
        %265 = vmatprep.subr.mxu0 %v263
        %266 = vmatpush1.msra.mxu0 %v261
        %267 = vmatprep.subr.mxu0 0.0
        %268 = vmatpush1.msra.mxu0 0.0
        %269 = vmatprep.subr.mxu0 0.0
        %270 = vmatpush1.msra.mxu0 0.0
        %271 = vmatprep.subr.mxu0 0.0
        %272 = vmatpush1.msra.mxu0 0.0
        %273 = vmatprep.subr.mxu0 0.0
        %274 = vmatpush1.msra.mxu0 0.0
        %275 = vmatprep.subr.mxu0 0.0
        %276 = vmatpush1.msra.mxu0 0.0
        %277 = vmatprep.subr.mxu0 0.0
        %278 = vmatpush1.msra.mxu0 0.0
        %279 = vmatprep.subr.mxu0 0.0
        %280 = vmatpush1.msra.mxu0 0.0
        %281 = vmatprep.subr.mxu0 0.0
        %282 = vmatpush1.msra.mxu0 0.0
        %283 = vmatprep.subr.mxu0 0.0
        %284 = vmatpush1.msra.mxu0 0.0
        %285 = vmatprep.subr.mxu0 0.0
        %286 = vmatpush1.msra.mxu0 0.0
        %287 = vmatprep.subr.mxu0 0.0
        %288 = vmatpush1.msra.mxu0 0.0
        %289 = vmatprep.subr.mxu0 0.0
        %290 = vmatpush1.msra.mxu0 0.0
        %291 = vmatprep.subr.mxu0 0.0
        %292 = vmatpush1.msra.mxu0 0.0
        %293 = vmatprep.subr.mxu0 0.0
        %294 = vmatpush1.msra.mxu0 0.0
        %295 = vmatprep.subr.mxu0 0.0
        %296 = vmatpush1.msra.mxu0 0.0
        %297 = vmatprep.subr.mxu0 0.0
        %298 = vmatpush1.msra.mxu0 0.0
        %299 = vmatprep.subr.mxu0 0.0
        %300 = vmatpush1.msra.mxu0 0.0
        %301 = vmatprep.subr.mxu0 0.0
        %302 = vmatpush1.msra.mxu0 0.0
        %303 = vmatprep.subr.mxu0 0.0
        %304 = vmatpush1.msra.mxu0 0.0
        %305 = vmatprep.subr.mxu0 0.0
        %306 = vmatpush1.msra.mxu0 0.0
        %307 = vmatprep.subr.mxu0 0.0
        %308 = vmatpush1.msra.mxu0 0.0
        %309 = vmatprep.subr.mxu0 0.0
        %310 = vmatpush1.msra.mxu0 0.0
        %311 = vmatprep.subr.mxu0 0.0
        %312 = vmatpush1.msra.mxu0 0.0
        %313 = vmatprep.subr.mxu0 0.0
        %314 = vmatpush1.msra.mxu0 0.0
        %315 = vmatprep.subr.mxu0 0.0
        %316 = vmatpush1.msra.mxu0 0.0
        %317 = vmatprep.subr.mxu0 0.0
        %318 = vmatpush1.msra.mxu0 0.0
        %319 = vmatprep.subr.mxu0 0.0
        %320 = vmatpush1.msra.mxu0 0.0
        %321 = vmatprep.subr.mxu0 0.0
        %322 = vmatpush1.msra.mxu0 0.0
        %323 = vmatprep.subr.mxu0 0.0
        %324 = vmatpush1.msra.mxu0 0.0
        %325 = vmatprep.subr.mxu0 0.0
        %326 = vmatpush1.msra.mxu0 0.0
        %327 = vmatprep.subr.mxu0 0.0
        %328 = vmatpush1.msra.mxu0 0.0
        %329 = vmatprep.mubr.f32.mxu0 0.0
        %330 = vmatmul.mubr.f32.gmra.mrb[0].mxu0 %v258
        %v331 = vpop.f32.mrb[0].mxu0
        %v332 = vadd.f32 %v245, %v331
        %v333 = vpop.f32.mrb[0].mxu0
        %v334 = vadd.f32 %v246, %v333
        %335 = vdwg.mxu0
        %v336 = vmul.f32 %v332, 0.70710677
        %v337 = vmul.f32 %v334, 0.70710677
        %338 = vst [vmem:[%s230] sm:$0xff] %v336
        %339 = vst [vmem:[%s230 + $0x8] sm:$0xff] %v337
        %s340 = sand.u32 %s119, 1
        %s341 = scalar_lea.sflag [#allocation4], %s340
        %s342 = sand.u32 %s119, 1
        %s343 = smul.addr %s342, 16
        %s344 = scalar_lea.vmem [#allocation5], %s343
        // Predicated region
        $region37: #{tpu_custom_call.1} parent=31 // pred_check
          %p345 = pneg %p129
        $region38: #{tpu_custom_call.1} parent=31 // pred_check_branch
          %347 = sbr.rel (%p345) target = $region40
        $region39: #{tpu_custom_call.1} parent=31 // pred_region
          %s348 = smul.u32 2, %s25
          %s350 = ssub.s32 256, 256
          %351 = vsyncadd %s341, %s350
          %s352 = smul.addr %s24, 2
          %s353 = sadd.s32 %s348, %s352
          %s354 = smul.addr %s353, 128
          %s355 = scalar_lea.hbm %s3, %s354
          %s357 = sshll.u32 %s344, 4
          %s358 = int_to_ptr.vmem [resolvable:$true] %s357
          %360 = dma.vmem_to_hbm [thread:$0]  %s358, 256, %s355, %s341
        $region40: #{tpu_custom_call.1} parent=31 // pred_fallthru
          _
      $region32: #{tpu_custom_call.1} parent=5 // pred_fallthru
        _
      %p361 = scmp.le.s32.totalorder 2, %s15
      // Predicated region
      $region41: #{tpu_custom_call.1} parent=5 // pred_check
        %p362 = pneg %p361
      $region42: #{tpu_custom_call.1} parent=5 // pred_check_branch
        %364 = sbr.rel (%p362) target = $region44
      $region43: #{tpu_custom_call.1} parent=5 // pred_region
        %s365 = ssub.s32 %s15, 2
        // Predicated region
        $region45: #{tpu_custom_call.1} parent=43 // pred_check
          %p366 = pneg %p135
        $region46: #{tpu_custom_call.1} parent=43 // pred_check_branch
          %368 = sbr.rel (%p366) target = $region48
        $region47: #{tpu_custom_call.1} parent=43 // pred_region
          %s369 = sand.u32 %s120, 1
          %s370 = scalar_lea.sflag [#allocation4], %s369
          %s371 = sand.u32 %s120, 1
          %s372 = smul.addr %s371, 16
          %s373 = scalar_lea.vmem [#allocation5], %s372
          %374 = dma.done %s370, 256
        $region48: #{tpu_custom_call.1} parent=43 // pred_fallthru
          _
      $region44: #{tpu_custom_call.1} parent=5 // pred_fallthru
        _
    $region6: #{tpu_custom_call.1} parent=1 // loop_footer
      %s19 = sadd.s32 1, %s15
    $region7: #{tpu_custom_call.1} parent=1 // loop_footer_branch
      %14 = sbr.rel target = $region3
    $region8: #{tpu_custom_call.1} parent=1 // loop_exit
      _
    %375 = vsyncpa [#allocation3], 1
    %s376 = scalar_lea.sflag [#allocation3], 1
    %377 = vsyncpa %s376, 1
    %378 = vsyncpa [#allocation4], 1
    %s379 = scalar_lea.sflag [#allocation4], 1
    %380 = vsyncpa %s379, 1

</llo_original>
